<compile_context>
chip_gen: v7x
topology: tpu7x:2x2x1
jax: 0.10.0
libtpu: 0.0.40
codegen_flags: <defaults>
</compile_context>

<pallas_src>
import jax
import jax.numpy as jnp
from jax.experimental import pallas as pl
from jax.experimental.pallas import tpu as pltpu


def _round_up(x: int, n: int) -> int:
    return ((x + n - 1) // n) * n


def _make_kernel(act: str, use_bias: bool):
    def body(x_ref, w1_ref, b1_ref, w2_ref, o_ref):
        # fc1: (TILE_N, d_pad) @ (d_pad, m_pad) -> (TILE_N, m_pad), f32 acc [MXU]
        y = jnp.dot(x_ref[...], w1_ref[...], preferred_element_type=jnp.float32)
        if b1_ref is not None:
            y = y + b1_ref[...]  # (1, m_pad) broadcast over rows  [VPU]
        # activation  [VPU / EUP]
        z = jnp.maximum(y, 0.0) if act == "ReLU" else jnp.tanh(y)
        # fc2: weighted lane reduction instead of a 1-lane-wide MXU matmul.
        # (TILE_N, m_pad) * (1, m_pad) -> sum over lanes -> (TILE_N,)  [VPU + XLU]
        r = jnp.sum(z * w2_ref[...], axis=-1)
        # Lane-dense store: one (1, TILE_N) row per grid step.
        o_ref[...] = r.reshape(1, o_ref.shape[1])

    if use_bias:
        def kernel(x_ref, w1_ref, b1_ref, w2_ref, o_ref):
            body(x_ref, w1_ref, b1_ref, w2_ref, o_ref)
    else:
        def kernel(x_ref, w1_ref, w2_ref, o_ref):
            body(x_ref, w1_ref, None, w2_ref, o_ref)
    return kernel


def two_layer_nn(x, w1_t, b1, w2_row, *, act="ReLU", bias_status=True,
                 tile_n=None, matmul_dtype=jnp.float32):
    """Forward pass of TwoLayerNN.

    x:      (N, d) f32
    w1_t:   (d, m)  -- fc1.weight (torch shape (m, d)) stored transposed
    b1:     (1, m)  -- fc1.bias (ignored if bias_status=False)
    w2_row: (1, m)  -- fc2.weight, torch layout
    Returns (N, 1) f32.
    """
    N, d = x.shape
    m = w1_t.shape[1]

    # Lane-full padding for feature dims; sublane/lane-aligned batch tile.
    d_pad = _round_up(d, 128)
    m_pad = _round_up(m, 128)
    if tile_n is None:
        tile_n = min(512, _round_up(max(N, 1), 128))
    n_pad = _round_up(max(N, 1), tile_n)
    num_tiles = n_pad // tile_n

    f32 = jnp.float32
    xp = jnp.zeros((n_pad, d_pad), matmul_dtype).at[:N, :d].set(
        x.astype(matmul_dtype))
    w1p = jnp.zeros((d_pad, m_pad), matmul_dtype).at[:d, :m].set(
        w1_t.astype(matmul_dtype))
    w2p = jnp.zeros((1, m_pad), f32).at[:, :m].set(
        jnp.asarray(w2_row, f32).reshape(1, m))

    args = [xp, w1p]
    in_specs = [
        pl.BlockSpec((tile_n, d_pad), lambda i: (i, 0)),   # pipelined over batch
        pl.BlockSpec((d_pad, m_pad), lambda i: (0, 0)),    # VMEM-resident weight
    ]
    if bias_status:
        b1p = jnp.zeros((1, m_pad), f32).at[:, :m].set(
            jnp.asarray(b1, f32).reshape(1, m))
        args.append(b1p)
        in_specs.append(pl.BlockSpec((1, m_pad), lambda i: (0, 0)))
    args.append(w2p)
    in_specs.append(pl.BlockSpec((1, m_pad), lambda i: (0, 0)))

    kernel = _make_kernel(act, bias_status)

    out = pl.pallas_call(
        kernel,
        out_shape=jax.ShapeDtypeStruct((1, n_pad), f32),
        grid=(num_tiles,),
        in_specs=in_specs,
        out_specs=pl.BlockSpec((1, tile_n), lambda i: (0, i)),  # lane-dense output
        compiler_params=pltpu.CompilerParams(
            dimension_semantics=("parallel",),      # shard batch tiles on v7x's 2 TCs
            vmem_limit_bytes=32 * 1024 * 1024,      # fits v5e/v6e/v7x scoped VMEM
        ),
    )(*args)

    # Back to the PyTorch (N, 1) layout; drop padded rows.
    return out[0, :N].reshape(N, 1)


def init_params(key, d, m, bias_status=True):
    """Mirror nn.Linear's uniform(-1/sqrt(d), 1/sqrt(d)) init for fc1 and the
    module's fixed fc2 weights 1/m * [-1..-1, 1..1]."""
    k_w, k_b = jax.random.split(key)
    bound = 1.0 / jnp.sqrt(jnp.float32(d))
    w1 = jax.random.uniform(k_w, (m, d), jnp.float32, -bound, bound)  # torch (m, d)
    w1_t = w1.T                                                       # stored (d, m)
    if bias_status:
        b1 = jax.random.uniform(k_b, (1, m), jnp.float32, -bound, bound)
    else:
        b1 = jnp.zeros((1, m), jnp.float32)
    half = int(m / 2)
    w2_row = (1.0 / m) * jnp.concatenate(
        [-jnp.ones((half,), jnp.float32), jnp.ones((m - half,), jnp.float32)]
    ).reshape(1, m)
    return w1_t, b1, w2_row


def reference(x, w1_t, b1, w2_row, act="ReLU", bias_status=True):
    y = x @ w1_t
    if bias_status:
        y = y + b1
    z = jnp.maximum(y, 0.0) if act == "ReLU" else jnp.tanh(y)
    return jnp.sum(z * w2_row, axis=-1, keepdims=True)


if __name__ == "__main__":
    # Small shapes consistent with the module: batch=8, d=16, m=32.
    N, d, m = 8, 16, 32

    key = jax.random.PRNGKey(0)
    k_x, k_p = jax.random.split(key)
    x = jax.random.normal(k_x, (N, d), jnp.float32)

    # Config 1: ReLU activation, fc1 bias enabled.
    w1_t, b1, w2_row = init_params(k_p, d, m, bias_status=True)
    out = two_layer_nn(x, w1_t, b1, w2_row, act="ReLU", bias_status=True)
    out = jax.block_until_ready(out)
    ref = reference(x, w1_t, b1, w2_row, act="ReLU", bias_status=True)
    assert out.shape == (N, 1)
    assert jnp.allclose(out, ref, atol=1e-5, rtol=1e-5), "ReLU/bias mismatch"

    # Config 2: Tanh activation, no fc1 bias (exercises the 3-input kernel).
    w1_t2, b1_2, w2_row2 = init_params(k_p, d, m, bias_status=False)
    out2 = two_layer_nn(x, w1_t2, b1_2, w2_row2, act="Tanh", bias_status=False)
    out2 = jax.block_until_ready(out2)
    ref2 = reference(x, w1_t2, b1_2, w2_row2, act="Tanh", bias_status=False)
    assert out2.shape == (N, 1)
    assert jnp.allclose(out2, ref2, atol=1e-5, rtol=1e-5), "Tanh/no-bias mismatch"

    print("KERNEL_OK")
</pallas_src>

<mosaic_0001>
module attributes {stable_mosaic.version = 11 : i64} {
  func.func @kernel(%arg0: i32, %arg1: memref<128x128xf32, #tpu.memory_space<vmem>>, %arg2: memref<128x128xf32, #tpu.memory_space<vmem>>, %arg3: memref<1x128xf32, #tpu.memory_space<vmem>>, %arg4: memref<1x128xf32, #tpu.memory_space<vmem>>, %arg5: memref<1x128xf32, #tpu.memory_space<vmem>>) attributes {dimension_semantics = [#tpu.dimension_semantics<parallel>], iteration_bounds = array<i64: 1>, scalar_prefetch = 0 : i64, scratch_operands = 0 : i64, tpu.core_type = #tpu.core_type<tc>, window_params = [{transform_indices = @transform_0, window_bounds = array<i64: 128, 128>}, {pipeline_mode = #tpu.pipeline_mode<synchronous>, transform_indices = @transform_1, window_bounds = array<i64: 128, 128>}, {pipeline_mode = #tpu.pipeline_mode<synchronous>, transform_indices = @transform_2, window_bounds = array<i64: 1, 128>}, {pipeline_mode = #tpu.pipeline_mode<synchronous>, transform_indices = @transform_3, window_bounds = array<i64: 1, 128>}, {transform_indices = @transform_4, window_bounds = array<i64: 1, 128>}]} {
    %c0 = arith.constant 0 : index
    %c0_0 = arith.constant 0 : index
    %0 = vector.load %arg1[%c0, %c0_0] : memref<128x128xf32, #tpu.memory_space<vmem>>, vector<128x128xf32>
    %c0_1 = arith.constant 0 : index
    %c0_2 = arith.constant 0 : index
    %1 = vector.load %arg2[%c0_1, %c0_2] : memref<128x128xf32, #tpu.memory_space<vmem>>, vector<128x128xf32>
    %cst = arith.constant dense<0.000000e+00> : vector<128x128xf32>
    %2 = tpu.matmul %0, %1, %cst {dimension_numbers = #tpu.dot_dimension_numbers<[1], [0], [0], [1], [0, 0, 1, 1], [], []>} : vector<128x128xf32>, vector<128x128xf32>, vector<128x128xf32> -> vector<128x128xf32>
    %c0_3 = arith.constant 0 : index
    %c0_4 = arith.constant 0 : index
    %3 = vector.load %arg3[%c0_3, %c0_4] : memref<1x128xf32, #tpu.memory_space<vmem>>, vector<1x128xf32>
    %4 = vector.broadcast %3 : vector<1x128xf32> to vector<128x128xf32>
    %5 = arith.addf %2, %4 : vector<128x128xf32>
    %cst_5 = arith.constant 0.000000e+00 : f32
    %6 = vector.broadcast %cst_5 : f32 to vector<128x128xf32>
    %7 = arith.maximumf %5, %6 : vector<128x128xf32>
    %c0_6 = arith.constant 0 : index
    %c0_7 = arith.constant 0 : index
    %8 = vector.load %arg4[%c0_6, %c0_7] : memref<1x128xf32, #tpu.memory_space<vmem>>, vector<1x128xf32>
    %9 = vector.broadcast %8 : vector<1x128xf32> to vector<128x128xf32>
    %10 = arith.mulf %7, %9 : vector<128x128xf32>
    %cst_8 = arith.constant dense<0.000000e+00> : vector<128xf32>
    %11 = vector.multi_reduction <add>, %10, %cst_8 [1] : vector<128x128xf32> to vector<128xf32>
    %12 = vector.shape_cast %11 : vector<128xf32> to vector<1x128xf32>
    %c0_9 = arith.constant 0 : index
    %c0_10 = arith.constant 0 : index
    %13 = vector.load %arg5[%c0_9, %c0_10] : memref<1x128xf32, #tpu.memory_space<vmem>>, vector<1x128xf32>
    tpu.vector_store %arg5[%c0_9, %c0_10], %12 {strides = array<i32>} : memref<1x128xf32, #tpu.memory_space<vmem>>, vector<1x128xf32>,
    return
  }
  func.func @transform_0(%arg0: i32) -> (i32, i32) {
    %c0_i32 = arith.constant 0 : i32
    %c0_i32_0 = arith.constant 0 : i32
    return %arg0, %c0_i32 : i32, i32
  }
  func.func @transform_1(%arg0: i32) -> (i32, i32) {
    %c0_i32 = arith.constant 0 : i32
    %c0_i32_0 = arith.constant 0 : i32
    %c0_i32_1 = arith.constant 0 : i32
    return %c0_i32, %c0_i32_0 : i32, i32
  }
  func.func @transform_2(%arg0: i32) -> (i32, i32) {
    %c0_i32 = arith.constant 0 : i32
    %c0_i32_0 = arith.constant 0 : i32
    %c0_i32_1 = arith.constant 0 : i32
    return %c0_i32, %c0_i32_0 : i32, i32
  }
  func.func @transform_3(%arg0: i32) -> (i32, i32) {
    %c0_i32 = arith.constant 0 : i32
    %c0_i32_0 = arith.constant 0 : i32
    %c0_i32_1 = arith.constant 0 : i32
    return %c0_i32, %c0_i32_0 : i32, i32
  }
  func.func @transform_4(%arg0: i32) -> (i32, i32) {
    %c0_i32 = arith.constant 0 : i32
    %c0_i32_0 = arith.constant 0 : i32
    return %c0_i32, %arg0 : i32, i32
  }
}

</mosaic_0001>

<llo_original>
// kernel: tpu_custom_call.1
$region0: #{tpu_custom_call.1}
  #allocation0 [shape = 'u32[]', space=smem, size = 0x4, offset = 0x4, fixed_abs, tag = 'smem constant byte address 0x4 - core index']
  #allocation1 [shape = 'u32[144,128]{1,0:T(1,128)}', space=vmem, size = 0x12000, scoped, tag = 'internal scratch']
  %s0 = inlined_call_operand.hbm [shape: f32[128,128], index: 0, kind: input, shape index: {}]
  %s1 = inlined_call_operand.hbm [shape: f32[128,128], index: 1, kind: input, shape index: {}]
  %s2 = inlined_call_operand.vmem [shape: f32[1,128], index: 2, kind: input, shape index: {}]
  %s3 = inlined_call_operand.vmem [shape: f32[1,128], index: 3, kind: input, shape index: {}]
  %s4 = inlined_call_operand.hbm [shape: f32[1,128], index: 4, kind: output, shape index: {}]
  %s5 = sld [smem:[#allocation0]]
  $region34: #{tpu_custom_call.1} parent=0
    _
  %s7 = ssub.s32 1, %s5
  %s8 = scalar_select 0, %s7, %s5
  $region1: #{tpu_custom_call.1} parent=0
    #allocation2 [shape = 'u8[65536]{0}', space=vmem, size = 0x10000, scoped, tag = 'input window, operand 0, single buffered']
    #allocation3 [shape = 's32[1]{0}', space=sflag, size = 0x4, scoped, tag = 'scoped memory for tpu_custom_call.1']
    #allocation4 [shape = 's32[1]{0}', space=sflag, size = 0x4, scoped, tag = 'scoped memory for tpu_custom_call.1']
    #allocation5 [shape = 'u8[65536]{0}', space=vmem, size = 0x10000, scoped, tag = 'input window, operand 1, single buffered']
    #allocation6 [shape = 's32[1]{0}', space=sflag, size = 0x4, scoped, tag = 'scoped memory for tpu_custom_call.1']
    #allocation7 [shape = 'u8[512]{0}', space=vmem, size = 0x400, scoped, tag = 'output window, operand 0, single buffered']
    %9 = vsyncpa [#allocation3], 0
    %10 = vsyncpa [#allocation6], 0
    %11 = vsyncpa [#allocation4], 0
    // Predicated region
    $region2: #{tpu_custom_call.1} parent=1 // pred_check
      _
    $region3: #{tpu_custom_call.1} parent=1 // pred_check_branch
      %13 = sbr.rel (0) target = $region5
    $region4: #{tpu_custom_call.1} parent=1 // pred_region
      %s15 = ssub.s32 2048, 2048
      %16 = vsyncadd [#allocation3], %s15
      %s17 = sshll.u32 [#allocation2], 4
      %s18 = int_to_ptr.vmem [resolvable:$true] %s17
      %23 = dma.hbm_to_vmem [thread:$0]  %s0, 2048, %s18, [#allocation3], 128, 128, 8
    $region5: #{tpu_custom_call.1} parent=1 // pred_fallthru
      _
    // Predicated region
    $region6: #{tpu_custom_call.1} parent=1 // pred_check
      _
    $region7: #{tpu_custom_call.1} parent=1 // pred_check_branch
      %25 = sbr.rel (0) target = $region9
    $region8: #{tpu_custom_call.1} parent=1 // pred_region
      %s27 = ssub.s32 2048, 2048
      %28 = vsyncadd [#allocation6], %s27
      %s29 = sshll.u32 [#allocation5], 4
      %s30 = int_to_ptr.vmem [resolvable:$true] %s29
      %35 = dma.hbm_to_vmem [thread:$0]  %s1, 2048, %s30, [#allocation6], 128, 128, 8
    $region9: #{tpu_custom_call.1} parent=1 // pred_fallthru
      _
    // Predicated region
    $region10: #{tpu_custom_call.1} parent=1 // pred_check
      _
    $region11: #{tpu_custom_call.1} parent=1 // pred_check_branch
      %37 = sbr.rel (0) target = $region13
    $region12: #{tpu_custom_call.1} parent=1 // pred_region
      _
    $region13: #{tpu_custom_call.1} parent=1 // pred_fallthru
      _
    // Predicated region
    $region14: #{tpu_custom_call.1} parent=1 // pred_check
      _
    $region15: #{tpu_custom_call.1} parent=1 // pred_check_branch
      %39 = sbr.rel (0) target = $region17
    $region16: #{tpu_custom_call.1} parent=1 // pred_region
      _
    $region17: #{tpu_custom_call.1} parent=1 // pred_fallthru
      _
    // Predicated region
    $region18: #{tpu_custom_call.1} parent=1 // pred_check
      _
    $region19: #{tpu_custom_call.1} parent=1 // pred_check_branch
      %41 = sbr.rel (0) target = $region21
    $region20: #{tpu_custom_call.1} parent=1 // pred_region
      %42 = dma.done [#allocation3], 2048
    $region21: #{tpu_custom_call.1} parent=1 // pred_fallthru
      _
    // Predicated region
    $region22: #{tpu_custom_call.1} parent=1 // pred_check
      _
    $region23: #{tpu_custom_call.1} parent=1 // pred_check_branch
      %44 = sbr.rel (0) target = $region25
    $region24: #{tpu_custom_call.1} parent=1 // pred_region
      %45 = dma.done [#allocation6], 2048
    $region25: #{tpu_custom_call.1} parent=1 // pred_fallthru
      _
    %v46 = vld [vmem:[#allocation2] sm:$0xff]
    %v47 = vld [vmem:[#allocation2 + $0x8] sm:$0xff]
    %v48 = vld [vmem:[#allocation2 + $0x10] sm:$0xff]
    %v49 = vld [vmem:[#allocation2 + $0x18] sm:$0xff]
    %v50 = vld [vmem:[#allocation2 + $0x20] sm:$0xff]
    %v51 = vld [vmem:[#allocation2 + $0x28] sm:$0xff]
    %v52 = vld [vmem:[#allocation2 + $0x30] sm:$0xff]
    %v53 = vld [vmem:[#allocation2 + $0x38] sm:$0xff]
    %v54 = vld [vmem:[#allocation2 + $0x40] sm:$0xff]
    %v55 = vld [vmem:[#allocation2 + $0x48] sm:$0xff]
    %v56 = vld [vmem:[#allocation2 + $0x50] sm:$0xff]
    %v57 = vld [vmem:[#allocation2 + $0x58] sm:$0xff]
    %v58 = vld [vmem:[#allocation2 + $0x60] sm:$0xff]
    %v59 = vld [vmem:[#allocation2 + $0x68] sm:$0xff]
    %v60 = vld [vmem:[#allocation2 + $0x70] sm:$0xff]
    %v61 = vld [vmem:[#allocation2 + $0x78] sm:$0xff]
    %v62 = vld [vmem:[#allocation5] sm:$0xff]
    %v63 = vld [vmem:[#allocation5 + $0x8] sm:$0xff]
    %v64 = vld [vmem:[#allocation5 + $0x10] sm:$0xff]
    %v65 = vld [vmem:[#allocation5 + $0x18] sm:$0xff]
    %v66 = vld [vmem:[#allocation5 + $0x20] sm:$0xff]
    %v67 = vld [vmem:[#allocation5 + $0x28] sm:$0xff]
    %v68 = vld [vmem:[#allocation5 + $0x30] sm:$0xff]
    %v69 = vld [vmem:[#allocation5 + $0x38] sm:$0xff]
    %v70 = vld [vmem:[#allocation5 + $0x40] sm:$0xff]
    %v71 = vld [vmem:[#allocation5 + $0x48] sm:$0xff]
    %v72 = vld [vmem:[#allocation5 + $0x50] sm:$0xff]
    %v73 = vld [vmem:[#allocation5 + $0x58] sm:$0xff]
    %v74 = vld [vmem:[#allocation5 + $0x60] sm:$0xff]
    %v75 = vld [vmem:[#allocation5 + $0x68] sm:$0xff]
    %v76 = vld [vmem:[#allocation5 + $0x70] sm:$0xff]
    %v77 = vld [vmem:[#allocation5 + $0x78] sm:$0xff]
    %v78 = vld [vmem:[%s2] sm:$0x1]
    %v80 = vlaneseq
    %v81 = vshrl.u32 %v80, 7
    %v82 = vsub.s32 0, %v81
    %v83 = vrot.slane %v78, %v82
    %85 = vmatprep.subr.mxu0 0.0
    %86 = vmatpush1.msra.mxu0 %v62
    %87 = vmatprep.subr.mxu0 0.0
    %88 = vmatpush1.msra.mxu0 %v63
    %89 = vmatprep.subr.mxu0 0.0
    %90 = vmatpush1.msra.mxu0 %v64
    %91 = vmatprep.subr.mxu0 0.0
    %92 = vmatpush1.msra.mxu0 %v65
    %93 = vmatprep.subr.mxu0 0.0
    %94 = vmatpush1.msra.mxu0 %v66
    %95 = vmatprep.subr.mxu0 0.0
    %96 = vmatpush1.msra.mxu0 %v67
    %97 = vmatprep.subr.mxu0 0.0
    %98 = vmatpush1.msra.mxu0 %v68
    %99 = vmatprep.subr.mxu0 0.0
    %100 = vmatpush1.msra.mxu0 %v69
    %101 = vmatprep.subr.mxu0 0.0
    %102 = vmatpush1.msra.mxu0 %v70
    %103 = vmatprep.subr.mxu0 0.0
    %104 = vmatpush1.msra.mxu0 %v71
    %105 = vmatprep.subr.mxu0 0.0
    %106 = vmatpush1.msra.mxu0 %v72
    %107 = vmatprep.subr.mxu0 0.0
    %108 = vmatpush1.msra.mxu0 %v73
    %109 = vmatprep.subr.mxu0 0.0
    %110 = vmatpush1.msra.mxu0 %v74
    %111 = vmatprep.subr.mxu0 0.0
    %112 = vmatpush1.msra.mxu0 %v75
    %113 = vmatprep.subr.mxu0 0.0
    %114 = vmatpush1.msra.mxu0 %v76
    %115 = vmatprep.subr.mxu0 0.0
    %116 = vmatpush1.msra.mxu0 %v77
    %117 = vmatprep.subr.mxu0 0.0
    %118 = vmatpush1.msra.mxu0 0.0
    %119 = vmatprep.subr.mxu0 0.0
    %120 = vmatpush1.msra.mxu0 0.0
    %121 = vmatprep.subr.mxu0 0.0
    %122 = vmatpush1.msra.mxu0 0.0
    %123 = vmatprep.subr.mxu0 0.0
    %124 = vmatpush1.msra.mxu0 0.0
    %125 = vmatprep.subr.mxu0 0.0
    %126 = vmatpush1.msra.mxu0 0.0
    %127 = vmatprep.subr.mxu0 0.0
    %128 = vmatpush1.msra.mxu0 0.0
    %129 = vmatprep.subr.mxu0 0.0
    %130 = vmatpush1.msra.mxu0 0.0
    %131 = vmatprep.subr.mxu0 0.0
    %132 = vmatpush1.msra.mxu0 0.0
    %133 = vmatprep.subr.mxu0 0.0
    %134 = vmatpush1.msra.mxu0 0.0
    %135 = vmatprep.subr.mxu0 0.0
    %136 = vmatpush1.msra.mxu0 0.0
    %137 = vmatprep.subr.mxu0 0.0
    %138 = vmatpush1.msra.mxu0 0.0
    %139 = vmatprep.subr.mxu0 0.0
    %140 = vmatpush1.msra.mxu0 0.0
    %141 = vmatprep.subr.mxu0 0.0
    %142 = vmatpush1.msra.mxu0 0.0
    %143 = vmatprep.subr.mxu0 0.0
    %144 = vmatpush1.msra.mxu0 0.0
    %145 = vmatprep.subr.mxu0 0.0
    %146 = vmatpush1.msra.mxu0 0.0
    %147 = vmatprep.subr.mxu0 0.0
    %148 = vmatpush1.msra.mxu0 0.0
    %149 = vmatprep.mubr.f32.mxu0 0.0
    %150 = vmatmul.mubr.f32.gmra.mrb[0].mxu0 %v46
    %v151 = vpop.f32.mrb[0].mxu0
    %v152 = vadd.f32 %v83, %v151
    %v153 = vpop.f32.mrb[0].mxu0
    %154 = vmatprep.mubr.f32.mxu0 0.0
    %155 = vmatmul.mubr.f32.gmra.mrb[0].mxu0 %v47
    %v156 = vpop.f32.mrb[0].mxu0
    %v157 = vadd.f32 %v83, %v156
    %v158 = vpop.f32.mrb[0].mxu0
    %159 = vmatprep.mubr.f32.mxu0 0.0
    %160 = vmatmul.mubr.f32.gmra.mrb[0].mxu0 %v48
    %v161 = vpop.f32.mrb[0].mxu0
    %v162 = vadd.f32 %v83, %v161
    %v163 = vpop.f32.mrb[0].mxu0
    %164 = vmatprep.mubr.f32.mxu0 0.0
    %165 = vmatmul.mubr.f32.gmra.mrb[0].mxu0 %v49
    %v166 = vpop.f32.mrb[0].mxu0
    %v167 = vadd.f32 %v83, %v166
    %v168 = vpop.f32.mrb[0].mxu0
    %169 = vmatprep.mubr.f32.mxu0 0.0
    %170 = vmatmul.mubr.f32.gmra.mrb[0].mxu0 %v50
    %v171 = vpop.f32.mrb[0].mxu0
    %v172 = vadd.f32 %v83, %v171
    %v173 = vpop.f32.mrb[0].mxu0
    %174 = vmatprep.mubr.f32.mxu0 0.0
    %175 = vmatmul.mubr.f32.gmra.mrb[0].mxu0 %v51
    %v176 = vpop.f32.mrb[0].mxu0
    %v177 = vadd.f32 %v83, %v176
    %v178 = vpop.f32.mrb[0].mxu0
    %179 = vmatprep.mubr.f32.mxu0 0.0
    %180 = vmatmul.mubr.f32.gmra.mrb[0].mxu0 %v52
    %v181 = vpop.f32.mrb[0].mxu0
    %v182 = vadd.f32 %v83, %v181
    %v183 = vpop.f32.mrb[0].mxu0
    %184 = vmatprep.mubr.f32.mxu0 0.0
    %185 = vmatmul.mubr.f32.gmra.mrb[0].mxu0 %v53
    %v186 = vpop.f32.mrb[0].mxu0
    %v187 = vadd.f32 %v83, %v186
    %v188 = vpop.f32.mrb[0].mxu0
    %189 = vmatprep.mubr.f32.mxu0 0.0
    %190 = vmatmul.mubr.f32.gmra.mrb[0].mxu0 %v54
    %v191 = vpop.f32.mrb[0].mxu0
    %v192 = vadd.f32 %v83, %v191
    %v193 = vpop.f32.mrb[0].mxu0
    %194 = vmatprep.mubr.f32.mxu0 0.0
    %195 = vmatmul.mubr.f32.gmra.mrb[0].mxu0 %v55
    %v196 = vpop.f32.mrb[0].mxu0
    %v197 = vadd.f32 %v83, %v196
    %v198 = vpop.f32.mrb[0].mxu0
    %199 = vmatprep.mubr.f32.mxu0 0.0
    %200 = vmatmul.mubr.f32.gmra.mrb[0].mxu0 %v56
    %v201 = vpop.f32.mrb[0].mxu0
    %v202 = vadd.f32 %v83, %v201
    %v203 = vpop.f32.mrb[0].mxu0
    %204 = vmatprep.mubr.f32.mxu0 0.0
    %205 = vmatmul.mubr.f32.gmra.mrb[0].mxu0 %v57
    %v206 = vpop.f32.mrb[0].mxu0
    %v207 = vadd.f32 %v83, %v206
    %v208 = vpop.f32.mrb[0].mxu0
    %209 = vmatprep.mubr.f32.mxu0 0.0
    %210 = vmatmul.mubr.f32.gmra.mrb[0].mxu0 %v58
    %v211 = vpop.f32.mrb[0].mxu0
    %v212 = vadd.f32 %v83, %v211
    %v213 = vpop.f32.mrb[0].mxu0
    %214 = vmatprep.mubr.f32.mxu0 0.0
    %215 = vmatmul.mubr.f32.gmra.mrb[0].mxu0 %v59
    %v216 = vpop.f32.mrb[0].mxu0
    %v217 = vadd.f32 %v83, %v216
    %v218 = vpop.f32.mrb[0].mxu0
    %219 = vmatprep.mubr.f32.mxu0 0.0
    %220 = vmatmul.mubr.f32.gmra.mrb[0].mxu0 %v60
    %v221 = vpop.f32.mrb[0].mxu0
    %v222 = vadd.f32 %v83, %v221
    %v223 = vpop.f32.mrb[0].mxu0
    %224 = vmatprep.mubr.f32.mxu0 0.0
    %225 = vmatmul.mubr.f32.gmra.mrb[0].mxu0 %v61
    %v226 = vpop.f32.mrb[0].mxu0
    %v227 = vadd.f32 %v83, %v226
    %v228 = vpop.f32.mrb[0].mxu0
    %229 = vdwg.mxu0
    %v230 = vmax.f32 %v152, 0.0
    %v231 = vmax.f32 %v157, 0.0
    %v232 = vmax.f32 %v162, 0.0
    %v233 = vmax.f32 %v167, 0.0
    %v234 = vmax.f32 %v172, 0.0
    %v235 = vmax.f32 %v177, 0.0
    %v236 = vmax.f32 %v182, 0.0
    %v237 = vmax.f32 %v187, 0.0
    %v238 = vmax.f32 %v192, 0.0
    %v239 = vmax.f32 %v197, 0.0
    %v240 = vmax.f32 %v202, 0.0
    %v241 = vmax.f32 %v207, 0.0
    %v242 = vmax.f32 %v212, 0.0
    %v243 = vmax.f32 %v217, 0.0
    %v244 = vmax.f32 %v222, 0.0
    %v245 = vmax.f32 %v227, 0.0
    %v246 = vld [vmem:[%s3] sm:$0x1]
    %v248 = vlaneseq
    %v249 = vshrl.u32 %v248, 7
    %v250 = vsub.s32 0, %v249
    %v251 = vrot.slane %v246, %v250
    %v253 = vmul.f32 %v230, %v251
    %v254 = vmul.f32 %v231, %v251
    %v255 = vmul.f32 %v232, %v251
    %v256 = vmul.f32 %v233, %v251
    %v257 = vmul.f32 %v234, %v251
    %v258 = vmul.f32 %v235, %v251
    %v259 = vmul.f32 %v236, %v251
    %v260 = vmul.f32 %v237, %v251
    %v261 = vmul.f32 %v238, %v251
    %v262 = vmul.f32 %v239, %v251
    %v263 = vmul.f32 %v240, %v251
    %v264 = vmul.f32 %v241, %v251
    %v265 = vmul.f32 %v242, %v251
    %v266 = vmul.f32 %v243, %v251
    %v267 = vmul.f32 %v244, %v251
    %v268 = vmul.f32 %v245, %v251
    %269 = vadd.xlane.f32.xlu0 %v253
    %v270 = vpop.xlane.xlu0 %269
    %271 = vadd.xlane.f32.xlu0 %v254
    %v272 = vpop.xlane.xlu0 %271
    %273 = vadd.xlane.f32.xlu0 %v255
    %v274 = vpop.xlane.xlu0 %273
    %275 = vadd.xlane.f32.xlu0 %v256
    %v276 = vpop.xlane.xlu0 %275
    %277 = vadd.xlane.f32.xlu0 %v257
    %v278 = vpop.xlane.xlu0 %277
    %279 = vadd.xlane.f32.xlu0 %v258
    %v280 = vpop.xlane.xlu0 %279
    %281 = vadd.xlane.f32.xlu0 %v259
    %v282 = vpop.xlane.xlu0 %281
    %283 = vadd.xlane.f32.xlu0 %v260
    %v284 = vpop.xlane.xlu0 %283
    %285 = vadd.xlane.f32.xlu0 %v261
    %v286 = vpop.xlane.xlu0 %285
    %287 = vadd.xlane.f32.xlu0 %v262
    %v288 = vpop.xlane.xlu0 %287
    %289 = vadd.xlane.f32.xlu0 %v263
    %v290 = vpop.xlane.xlu0 %289
    %291 = vadd.xlane.f32.xlu0 %v264
    %v292 = vpop.xlane.xlu0 %291
    %293 = vadd.xlane.f32.xlu0 %v265
    %v294 = vpop.xlane.xlu0 %293
    %295 = vadd.xlane.f32.xlu0 %v266
    %v296 = vpop.xlane.xlu0 %295
    %297 = vadd.xlane.f32.xlu0 %v267
    %v298 = vpop.xlane.xlu0 %297
    %299 = vadd.xlane.f32.xlu0 %v268
    %v300 = vpop.xlane.xlu0 %299
    %v317 = vlaneseq
    %v318 = vand.u32 %v317, 127
    %v319 = vlaneseq
    %v320 = vshrl.u32 %v319, 7
    %v321 = vsub.s32 %v318, %v320
    %v322 = vrot.slane %v270, %v321
    %v323 = vadd.s32 %v318, 4294967288
    %v324 = vlaneseq
    %v325 = vshrl.u32 %v324, 7
    %v326 = vsub.s32 %v323, %v325
    %v327 = vrot.slane %v272, %v326
    %vm328 = vcmask 130112
    %v329 = vsel %vm328, %v327, %v322
    %v330 = vadd.s32 %v318, 4294967280
    %v331 = vlaneseq
    %v332 = vshrl.u32 %v331, 7
    %v333 = vsub.s32 %v330, %v332
    %v334 = vrot.slane %v274, %v333
    %vm335 = vcmask 195712
    %v336 = vsel %vm335, %v334, %v329
    %v337 = vadd.s32 %v318, 4294967272
    %v338 = vlaneseq
    %v339 = vshrl.u32 %v338, 7
    %v340 = vsub.s32 %v337, %v339
    %v341 = vrot.slane %v276, %v340
    %vm342 = vcmask 261312
    %v343 = vsel %vm342, %v341, %v336
    %v344 = vadd.s32 %v318, 4294967264
    %v345 = vlaneseq
    %v346 = vshrl.u32 %v345, 7
    %v347 = vsub.s32 %v344, %v346
    %v348 = vrot.slane %v278, %v347
    %vm349 = vcmask 326912
    %v350 = vsel %vm349, %v348, %v343
    %v351 = vadd.s32 %v318, 4294967256
    %v352 = vlaneseq
    %v353 = vshrl.u32 %v352, 7
    %v354 = vsub.s32 %v351, %v353
    %v355 = vrot.slane %v280, %v354
    %vm356 = vcmask 392512
    %v357 = vsel %vm356, %v355, %v350
    %v358 = vadd.s32 %v318, 4294967248
    %v359 = vlaneseq
    %v360 = vshrl.u32 %v359, 7
    %v361 = vsub.s32 %v358, %v360
    %v362 = vrot.slane %v282, %v361
    %vm363 = vcmask 458112
    %v364 = vsel %vm363, %v362, %v357
    %v365 = vadd.s32 %v318, 4294967240
    %v366 = vlaneseq
    %v367 = vshrl.u32 %v366, 7
    %v368 = vsub.s32 %v365, %v367
    %v369 = vrot.slane %v284, %v368
    %vm370 = vcmask 523712
    %v371 = vsel %vm370, %v369, %v364
    %v372 = vadd.s32 %v318, 4294967232
    %v373 = vlaneseq
    %v374 = vshrl.u32 %v373, 7
    %v375 = vsub.s32 %v372, %v374
    %v376 = vrot.slane %v286, %v375
    %vm377 = vcmask 589312
    %v378 = vsel %vm377, %v376, %v371
    %v379 = vadd.s32 %v318, 4294967224
    %v380 = vlaneseq
    %v381 = vshrl.u32 %v380, 7
    %v382 = vsub.s32 %v379, %v381
    %v383 = vrot.slane %v288, %v382
    %vm384 = vcmask 654912
    %v385 = vsel %vm384, %v383, %v378
    %v386 = vadd.s32 %v318, 4294967216
    %v387 = vlaneseq
    %v388 = vshrl.u32 %v387, 7
    %v389 = vsub.s32 %v386, %v388
    %v390 = vrot.slane %v290, %v389
    %vm391 = vcmask 720512
    %v392 = vsel %vm391, %v390, %v385
    %v393 = vadd.s32 %v318, 4294967208
    %v394 = vlaneseq
    %v395 = vshrl.u32 %v394, 7
    %v396 = vsub.s32 %v393, %v395
    %v397 = vrot.slane %v292, %v396
    %vm398 = vcmask 786112
    %v399 = vsel %vm398, %v397, %v392
    %v400 = vadd.s32 %v318, 4294967200
    %v401 = vlaneseq
    %v402 = vshrl.u32 %v401, 7
    %v403 = vsub.s32 %v400, %v402
    %v404 = vrot.slane %v294, %v403
    %vm405 = vcmask 851712
    %v406 = vsel %vm405, %v404, %v399
    %v407 = vadd.s32 %v318, 4294967192
    %v408 = vlaneseq
    %v409 = vshrl.u32 %v408, 7
    %v410 = vsub.s32 %v407, %v409
    %v411 = vrot.slane %v296, %v410
    %vm412 = vcmask 917312
    %v413 = vsel %vm412, %v411, %v406
    %v414 = vadd.s32 %v318, 4294967184
    %v415 = vlaneseq
    %v416 = vshrl.u32 %v415, 7
    %v417 = vsub.s32 %v414, %v416
    %v418 = vrot.slane %v298, %v417
    %vm419 = vcmask 982912
    %v420 = vsel %vm419, %v418, %v413
    %v421 = vadd.s32 %v318, 4294967176
    %v422 = vlaneseq
    %v423 = vshrl.u32 %v422, 7
    %v424 = vsub.s32 %v421, %v423
    %v425 = vrot.slane %v300, %v424
    %vm426 = vcmask 1048512
    %v427 = vsel %vm426, %v425, %v420
    %429 = vst [vmem:[#allocation7] sm:$0x1] %v427
    // Predicated region
    $region26: #{tpu_custom_call.1} parent=1 // pred_check
      _
    $region27: #{tpu_custom_call.1} parent=1 // pred_check_branch
      %431 = sbr.rel (0) target = $region29
    $region28: #{tpu_custom_call.1} parent=1 // pred_region
      %s433 = ssub.s32 16, 16
      %434 = vsyncadd [#allocation4], %s433
      %s436 = sshll.u32 [#allocation7], 4
      %s437 = int_to_ptr.vmem [resolvable:$true] %s436
      %439 = dma.vmem_to_hbm [thread:$0]  %s437, 16, %s4, [#allocation4]
    $region29: #{tpu_custom_call.1} parent=1 // pred_fallthru
      _
    // Predicated region
    $region30: #{tpu_custom_call.1} parent=1 // pred_check
      _
    $region31: #{tpu_custom_call.1} parent=1 // pred_check_branch
      %441 = sbr.rel (0) target = $region33
    $region32: #{tpu_custom_call.1} parent=1 // pred_region
      %442 = dma.done [#allocation4], 16
    $region33: #{tpu_custom_call.1} parent=1 // pred_fallthru
      _
    %443 = vsyncpa [#allocation3], 1
    %444 = vsyncpa [#allocation6], 1
    %445 = vsyncpa [#allocation4], 1

</llo_original>
